<compile_context>
chip_gen: v5e
topology: v5e:2x2
jax: 0.10.0
libtpu: 0.0.40
codegen_flags: <defaults>
</compile_context>

<pallas_src>
import functools

import jax
import jax.numpy as jnp
from jax.experimental import pallas as pl
from jax.experimental.pallas import tpu as pltpu


# ---------------------------------------------------------------------------
# kernels
# ---------------------------------------------------------------------------
def _fused_kernel(x_ref, w1_ref, w2_ref, o_ref, *, inv_hw):
    """Single pass: pool + excite + scale for one batch slab.

    x_ref/o_ref: (1, C, HW)   w1_ref: (Cr, C)   w2_ref: (C, Cr)
    """
    xb = x_ref[0]                                                   # (C, HW)
    y = jnp.sum(xb.astype(jnp.float32), axis=-1, keepdims=True) * inv_hw  # (C, 1)
    h = jnp.maximum(
        jnp.dot(w1_ref[...], y, preferred_element_type=jnp.float32), 0.0)
    s = jax.nn.sigmoid(
        jnp.dot(w2_ref[...], h, preferred_element_type=jnp.float32))
    gate = s[None].astype(x_ref.dtype)                              # (1, C, 1)
    o_ref[...] = (x_ref[...] * gate).astype(o_ref.dtype)


def _reduce_gate_kernel(x_ref, w1_ref, w2_ref, gate_ref, acc_ref,
                        *, inv_hw, hw, hw_tile):
    """Phase 1 (streaming): accumulate spatial sums; emit gate on last tile.

    x_ref:    (1, C, hw_tile)    w1_ref: (Cr, C)    w2_ref: (C, Cr)
    gate_ref: (1, C, 1) x.dtype  acc_ref: (1, C, 128) f32 scratch
    """
    k = pl.program_id(1)

    @pl.when(k == 0)
    def _init():
        acc_ref[...] = jnp.zeros_like(acc_ref)

    xb = x_ref[0].astype(jnp.float32)                               # (C, hw_tile)

    # Mask out-of-bounds lanes of the final spatial tile (OOB block reads are
    # unspecified).  Static skip when HW is tile-aligned.
    if hw % hw_tile != 0:
        rem = hw - k * hw_tile
        lane = jax.lax.broadcasted_iota(jnp.int32, xb.shape, dimension=1)
        xb = jnp.where(lane < rem, xb, 0.0)

    # Lane-wide accumulation: fold hw_tile lanes into a 128-wide column with
    # pure VPU adds (lane-tile-aligned slices, no relayout); the single
    # cross-lane reduce is deferred to the finalize step.
    partial = acc_ref[0]                                            # (C, 128)
    for j in range(hw_tile // 128):
        partial = partial + xb[:, j * 128:(j + 1) * 128]
    acc_ref[0] = partial

    @pl.when(k == pl.num_programs(1) - 1)
    def _finalize():
        y = jnp.sum(acc_ref[0], axis=-1, keepdims=True) * inv_hw    # (C, 1)
        h = jnp.maximum(
            jnp.dot(w1_ref[...], y, preferred_element_type=jnp.float32), 0.0)
        s = jax.nn.sigmoid(
            jnp.dot(w2_ref[...], h, preferred_element_type=jnp.float32))
        gate_ref[...] = s[None].astype(gate_ref.dtype)              # (1, C, 1)


def _scale_kernel(gate_ref, x_ref, o_ref):
    """Phase 2 (streaming): out = x * gate; gate (1, C, 1) broadcasts over lanes."""
    o_ref[...] = (x_ref[...] * gate_ref[...]).astype(o_ref.dtype)


# ---------------------------------------------------------------------------
# sizing helpers
# ---------------------------------------------------------------------------
_MAX_HW_TILE = 16384  # lanes; HBM roofline fraction saturates well before this


def _round_up(a, m):
    return ((a + m - 1) // m) * m


def _vmem_limit_bytes():
    """Generation-aware scoped-VMEM limit (~75% of physical, 96 MiB cap)."""
    cap = None
    try:
        cap = getattr(pltpu.get_tpu_info(), "vmem_capacity_bytes", None)
    except Exception:
        cap = None
    if not cap:
        cap = 64 * 1024 * 1024  # conservative (v7x-sized) fallback
    return min((int(cap) * 3) // 4, 96 * 1024 * 1024)


def _pick_hw_tile(hw, per_lane_bytes, budget_bytes, max_hw_tile):
    """Largest lane-dense spatial tile whose pipelined blocks fit the budget."""
    max_lanes = (budget_bytes // max(per_lane_bytes, 1)) // 128 * 128
    tile = min(_round_up(hw, 128), max(max_lanes, 128), max(max_hw_tile, 128))
    return max(128, (tile // 128) * 128)


# ---------------------------------------------------------------------------
# wrapper
# ---------------------------------------------------------------------------
def senet_forward(x, w1, w2, *, fuse=None, max_hw_tile=_MAX_HW_TILE):
    """x: (B, C, H, W); w1: (C//r, C) [= fc1.weight]; w2: (C, C//r) [= fc2.weight]."""
    B, C, H, W = x.shape
    Cr = w1.shape[0]
    HW = H * W
    itemsize = x.dtype.itemsize
    inv_hw = 1.0 / HW

    x2 = x.reshape(B, C, HW)

    vmem_limit = _vmem_limit_bytes()
    budget = (vmem_limit * 3) // 4              # headroom under the scoped limit
    weight_bytes = 2 * (2 * C * Cr * 4)         # w1 + w2, double-buffered, f32

    # ---- fused single-pass path: read x once, write out once ----------------
    slab = C * HW * itemsize
    fits = 4 * slab + weight_bytes + (64 << 10) <= budget
    if fuse is None:
        fuse = fits
    if fuse and not fits:
        raise ValueError("fuse=True requested but a (C, H*W) slab does not fit VMEM")

    if fuse:
        out = pl.pallas_call(
            functools.partial(_fused_kernel, inv_hw=inv_hw),
            out_shape=jax.ShapeDtypeStruct((B, C, HW), x.dtype),
            grid_spec=pltpu.PrefetchScalarGridSpec(
                num_scalar_prefetch=0,
                grid=(B,),
                in_specs=[
                    pl.BlockSpec((1, C, HW), lambda b: (b, 0, 0)),
                    pl.BlockSpec((Cr, C), lambda b: (0, 0)),
                    pl.BlockSpec((C, Cr), lambda b: (0, 0)),
                ],
                out_specs=pl.BlockSpec((1, C, HW), lambda b: (b, 0, 0)),
            ),
            compiler_params=pltpu.CompilerParams(
                dimension_semantics=("parallel",),
                vmem_limit_bytes=vmem_limit,
            ),
            cost_estimate=pl.CostEstimate(
                flops=2 * B * C * HW + 4 * B * C * Cr,
                transcendentals=B * C,
                bytes_accessed=2 * itemsize * B * C * HW + 8 * C * Cr,
            ),
        )(x2, w1, w2)
        return out.reshape(B, C, H, W)

    # ---- streaming two-pass path --------------------------------------------
    # NOTE(v7x, small B): phase 1 could additionally split HW across both
    # TensorCores via a leading parallel axis of partial sums; not needed for
    # the B >= 2 shapes exercised here.

    # Phase 1: only the input block is pipelined (gate/weights/scratch are small).
    p1_budget = budget - weight_bytes - C * 128 * 4
    hw_tile1 = _pick_hw_tile(HW, 2 * C * itemsize, p1_budget, max_hw_tile)
    n1 = pl.cdiv(HW, hw_tile1)

    gate = pl.pallas_call(
        functools.partial(_reduce_gate_kernel, inv_hw=inv_hw, hw=HW,
                          hw_tile=hw_tile1),
        out_shape=jax.ShapeDtypeStruct((B, C, 1), x.dtype),
        grid_spec=pltpu.PrefetchScalarGridSpec(
            num_scalar_prefetch=0,
            grid=(B, n1),
            in_specs=[
                pl.BlockSpec((1, C, hw_tile1), lambda b, k: (b, 0, k)),
                pl.BlockSpec((Cr, C), lambda b, k: (0, 0)),
                pl.BlockSpec((C, Cr), lambda b, k: (0, 0)),
            ],
            out_specs=pl.BlockSpec((1, C, 1), lambda b, k: (b, 0, 0)),
            scratch_shapes=[pltpu.VMEM((1, C, 128), jnp.float32)],
        ),
        compiler_params=pltpu.CompilerParams(
            dimension_semantics=("parallel", "arbitrary"),
            vmem_limit_bytes=vmem_limit,
        ),
        cost_estimate=pl.CostEstimate(
            flops=B * C * HW + 4 * B * C * Cr,
            transcendentals=B * C,
            bytes_accessed=itemsize * B * C * HW + 8 * C * Cr + itemsize * B * C,
        ),
    )(x2, w1, w2)

    # Phase 2: x block + out block, both pipelined.
    hw_tile2 = _pick_hw_tile(HW, 4 * C * itemsize, budget, max_hw_tile)
    n2 = pl.cdiv(HW, hw_tile2)

    # NOTE: if the caller can donate x, input_output_aliases={1: 0} halves the
    # HBM footprint (same bytes moved); left off so x stays valid for callers.
    out = pl.pallas_call(
        _scale_kernel,
        out_shape=jax.ShapeDtypeStruct((B, C, HW), x.dtype),
        grid_spec=pltpu.PrefetchScalarGridSpec(
            num_scalar_prefetch=0,
            grid=(B, n2),
            in_specs=[
                pl.BlockSpec((1, C, 1), lambda b, k: (b, 0, 0)),
                pl.BlockSpec((1, C, hw_tile2), lambda b, k: (b, 0, k)),
            ],
            out_specs=pl.BlockSpec((1, C, hw_tile2), lambda b, k: (b, 0, k)),
        ),
        compiler_params=pltpu.CompilerParams(
            dimension_semantics=("parallel", "parallel"),
            vmem_limit_bytes=vmem_limit,
        ),
        cost_estimate=pl.CostEstimate(
            flops=B * C * HW,
            transcendentals=0,
            bytes_accessed=2 * itemsize * B * C * HW + itemsize * B * C,
        ),
    )(gate, x2)

    return out.reshape(B, C, H, W)


# ---------------------------------------------------------------------------
# reference + test
# ---------------------------------------------------------------------------
def senet_reference(x, w1, w2):
    """Plain-JAX reference mirroring the PyTorch module (nn.Linear weight layout)."""
    y = jnp.mean(x, axis=(2, 3))                  # (B, C)
    h = jnp.maximum(y @ w1.T, 0.0)                # (B, Cr)
    s = jax.nn.sigmoid(h @ w2.T)                  # (B, C)
    return x * s[:, :, None, None]


if __name__ == "__main__":
    key = jax.random.PRNGKey(0)

    def _run_case(case_key, B, C, H, W, ratio, **kw):
        Cr = max(1, C // ratio)
        kx, k1, k2 = jax.random.split(case_key, 3)
        x = jax.random.normal(kx, (B, C, H, W), dtype=jnp.float32)
        # nn.Linear(C, C//r, bias=False).weight -> (C//r, C); second -> (C, C//r).
        w1 = jax.random.normal(k1, (Cr, C), dtype=jnp.float32) * 0.1
        w2 = jax.random.normal(k2, (C, Cr), dtype=jnp.float32) * 0.1

        out = jax.block_until_ready(senet_forward(x, w1, w2, **kw))
        ref = senet_reference(x, w1, w2)
        assert out.shape == (B, C, H, W)
        assert jnp.allclose(out, ref, atol=1e-5, rtol=1e-5), (
            f"mismatch vs reference for shape {(B, C, H, W)} kwargs={kw}")

    keys = jax.random.split(key, 4)
    # Fused single-pass path (slab fits VMEM): 128-aligned and unaligned HW.
    _run_case(keys[0], B=2, C=4, H=16, W=16, ratio=2)
    _run_case(keys[1], B=2, C=8, H=7, W=7, ratio=2)
    # Streaming two-pass path: multi-tile grid with a masked final spatial tile.
    _run_case(keys[2], B=2, C=8, H=15, W=20, ratio=2, fuse=False, max_hw_tile=128)
    # Streaming two-pass path: exactly tile-aligned HW (mask branch statically skipped).
    _run_case(keys[3], B=2, C=8, H=16, W=16, ratio=2, fuse=False, max_hw_tile=128)

    print("KERNEL_OK")
</pallas_src>

<mosaic_0001>
module attributes {stable_mosaic.version = 11 : i64} {
  func.func @_fused_kernel(%arg0: i32, %arg1: memref<1x4x256xf32, #tpu.memory_space<vmem>>, %arg2: memref<2x4xf32, #tpu.memory_space<vmem>>, %arg3: memref<4x2xf32, #tpu.memory_space<vmem>>, %arg4: memref<1x4x256xf32, #tpu.memory_space<vmem>>) attributes {dimension_semantics = [#tpu.dimension_semantics<parallel>], iteration_bounds = array<i64: 2>, scalar_prefetch = 0 : i64, scratch_operands = 0 : i64, tpu.core_type = #tpu.core_type<tc>, window_params = [{transform_indices = @transform_0, window_bounds = array<i64: 1, 4, 256>}, {pipeline_mode = #tpu.pipeline_mode<synchronous>, transform_indices = @transform_1, window_bounds = array<i64: 2, 4>}, {pipeline_mode = #tpu.pipeline_mode<synchronous>, transform_indices = @transform_2, window_bounds = array<i64: 4, 2>}, {transform_indices = @transform_3, window_bounds = array<i64: 1, 4, 256>}]} {
    %c0 = arith.constant 0 : index
    %c0_0 = arith.constant 0 : index
    %c0_1 = arith.constant 0 : index
    %0 = vector.load %arg1[%c0, %c0_0, %c0_1] : memref<1x4x256xf32, #tpu.memory_space<vmem>>, vector<1x4x256xf32>
    %1 = vector.shape_cast %0 : vector<1x4x256xf32> to vector<4x256xf32>
    %cst = arith.constant dense<0.000000e+00> : vector<4xf32>
    %2 = vector.multi_reduction <add>, %1, %cst [1] : vector<4x256xf32> to vector<4xf32>
    %3 = vector.shape_cast %2 : vector<4xf32> to vector<4x1xf32>
    %cst_2 = arith.constant 3.906250e-03 : f32
    %4 = vector.broadcast %cst_2 : f32 to vector<4x1xf32>
    %5 = arith.mulf %3, %4 : vector<4x1xf32>
    %c0_3 = arith.constant 0 : index
    %c0_4 = arith.constant 0 : index
    %6 = vector.load %arg2[%c0_3, %c0_4] : memref<2x4xf32, #tpu.memory_space<vmem>>, vector<2x4xf32>
    %cst_5 = arith.constant dense<0.000000e+00> : vector<2x1xf32>
    %7 = tpu.matmul %6, %5, %cst_5 {dimension_numbers = #tpu.dot_dimension_numbers<[1], [0], [0], [1], [0, 0, 1, 1], [], []>} : vector<2x4xf32>, vector<4x1xf32>, vector<2x1xf32> -> vector<2x1xf32>
    %cst_6 = arith.constant 0.000000e+00 : f32
    %8 = vector.broadcast %cst_6 : f32 to vector<2x1xf32>
    %9 = arith.maximumf %7, %8 : vector<2x1xf32>
    %c0_7 = arith.constant 0 : index
    %c0_8 = arith.constant 0 : index
    %10 = vector.load %arg3[%c0_7, %c0_8] : memref<4x2xf32, #tpu.memory_space<vmem>>, vector<4x2xf32>
    %cst_9 = arith.constant dense<0.000000e+00> : vector<4x1xf32>
    %11 = tpu.matmul %10, %9, %cst_9 {dimension_numbers = #tpu.dot_dimension_numbers<[1], [0], [0], [1], [0, 0, 1, 1], [], []>} : vector<4x2xf32>, vector<2x1xf32>, vector<4x1xf32> -> vector<4x1xf32>
    %12 = arith.negf %11 : vector<4x1xf32>
    %13 = math.exp %12 : vector<4x1xf32>
    %cst_10 = arith.constant 1.000000e+00 : f32
    %14 = vector.broadcast %cst_10 : f32 to vector<4x1xf32>
    %15 = arith.addf %14, %13 : vector<4x1xf32>
    %16 = arith.divf %14, %15 : vector<4x1xf32>
    %17 = vector.shape_cast %16 : vector<4x1xf32> to vector<1x4x1xf32>
    %c0_11 = arith.constant 0 : index
    %c0_12 = arith.constant 0 : index
    %c0_13 = arith.constant 0 : index
    %18 = vector.load %arg1[%c0_11, %c0_12, %c0_13] : memref<1x4x256xf32, #tpu.memory_space<vmem>>, vector<1x4x256xf32>
    %19 = vector.broadcast %17 : vector<1x4x1xf32> to vector<1x4x256xf32>
    %20 = arith.mulf %18, %19 : vector<1x4x256xf32>
    %c0_14 = arith.constant 0 : index
    %c0_15 = arith.constant 0 : index
    %c0_16 = arith.constant 0 : index
    %21 = vector.load %arg4[%c0_14, %c0_15, %c0_16] : memref<1x4x256xf32, #tpu.memory_space<vmem>>, vector<1x4x256xf32>
    tpu.vector_store %arg4[%c0_14, %c0_15, %c0_16], %20 {strides = array<i32>} : memref<1x4x256xf32, #tpu.memory_space<vmem>>, vector<1x4x256xf32>,
    return
  }
  func.func @transform_0(%arg0: i32) -> (i32, i32, i32) {
    %c0_i32 = arith.constant 0 : i32
    %c0_i32_0 = arith.constant 0 : i32
    %c0_i32_1 = arith.constant 0 : i32
    return %arg0, %c0_i32, %c0_i32_0 : i32, i32, i32
  }
  func.func @transform_1(%arg0: i32) -> (i32, i32) {
    %c0_i32 = arith.constant 0 : i32
    %c0_i32_0 = arith.constant 0 : i32
    %c0_i32_1 = arith.constant 0 : i32
    return %c0_i32, %c0_i32_0 : i32, i32
  }
  func.func @transform_2(%arg0: i32) -> (i32, i32) {
    %c0_i32 = arith.constant 0 : i32
    %c0_i32_0 = arith.constant 0 : i32
    %c0_i32_1 = arith.constant 0 : i32
    return %c0_i32, %c0_i32_0 : i32, i32
  }
  func.func @transform_3(%arg0: i32) -> (i32, i32, i32) {
    %c0_i32 = arith.constant 0 : i32
    %c0_i32_0 = arith.constant 0 : i32
    %c0_i32_1 = arith.constant 0 : i32
    return %arg0, %c0_i32, %c0_i32_0 : i32, i32, i32
  }
}

</mosaic_0001>

<llo_original>
// kernel: tpu_custom_call.1
$region0: #{tpu_custom_call.1}
  #allocation0 [shape = 'u32[]', space=smem, size = 0x4, offset = 0x4, fixed_abs, tag = 'smem constant byte address 0x4 - core index']
  #allocation1 [shape = 'u32[72,128]{1,0:T(1,128)}', space=vmem, size = 0x9000, scoped, tag = 'internal scratch']
  %s0 = inlined_call_operand.hbm [shape: f32[2,4,256], index: 0, kind: input, shape index: {}]
  %s1 = inlined_call_operand.vmem [shape: f32[2,4], index: 1, kind: input, shape index: {}]
  %s2 = inlined_call_operand.vmem [shape: f32[4,2], index: 2, kind: input, shape index: {}]
  %s3 = inlined_call_operand.hbm [shape: f32[2,4,256], index: 3, kind: output, shape index: {}]
  %s4 = sld [smem:[#allocation0]]
  $region49: #{tpu_custom_call.1} parent=0
    _
  %s6 = ssub.s32 1, %s4
  %s7 = scalar_select 0, %s6, %s4
  $region1: #{tpu_custom_call.1} parent=0
    #allocation2 [shape = 'u8[8192]{0}', space=vmem, size = 0x2000, scoped, tag = 'input window, operand 0']
    #allocation3 [shape = 's32[2]{0}', space=sflag, size = 0x8, scoped, tag = 'scoped memory for tpu_custom_call.1']
    #allocation4 [shape = 's32[2]{0}', space=sflag, size = 0x8, scoped, tag = 'scoped memory for tpu_custom_call.1']
    #allocation5 [shape = 'u8[8192]{0}', space=vmem, size = 0x2000, scoped, tag = 'output window, operand 0']
    %8 = vsyncpa [#allocation3], 0
    %s9 = scalar_lea.sflag [#allocation3], 1
    %10 = vsyncpa %s9, 0
    %11 = vsyncpa [#allocation4], 0
    %s12 = scalar_lea.sflag [#allocation4], 1
    %13 = vsyncpa %s12, 0
    loop: start=0, step=1, limit=4
    $region2: #{tpu_custom_call.1} parent=1 // loop_pre_header
      _
    $region3: #{tpu_custom_call.1} parent=1 // loop_header
      %s15 = sphi 0, %s19
      %p16 = scmp.ge.s32.totalorder %s15, 4
      %s25 = sphi 0, %s27
      %s28 = sphi 0, %s25
      %s29 = sphi 0, %s28
      %s45 = sphi 0, %s29
      %s49 = sphi 0, %s49
      %s51 = sphi 0, %s49
      %s52 = sphi 0, %s51
      %s66 = sphi 0, %s52
      %s70 = sphi 0, %s70
      %s72 = sphi 0, %s70
      %s73 = sphi 0, %s72
      %s87 = sphi 0, %s73
      %s93 = sphi 0, %s95
      %s96 = sphi 0, %s93
      %s97 = sphi 0, %s96
      %s113 = sphi 0, %s97
    $region4: #{tpu_custom_call.1} parent=1 // loop_header_branch
      %18 = sbr.rel (%p16) target = $region8
    $region5: #{tpu_custom_call.1} parent=1 // loop_body
      %s20 = ssub.s32 %s15, 1
      %s21 = ssub.s32 %s15, 2
      %s22 = sadd.s32 %s15, 1
      %s23 = ssub.s32 %s15, %s22
      %p24 = scmp.eq.s32.totalorder %s23, 0
      %s26 = sadd.s32 %s25, 1
      %s27 = scalar_select %p24, %s25, %s26
      %p30 = pneg %p24
      %p31 = scmp.eq.s32.totalorder %s15, 1
      %p32 = por %p30, %p31
      %p33 = scmp.ne.s32.totalorder %s25, %s28
      %p34 = scmp.eq.s32.totalorder %s15, 0
      %p35 = por %p33, %p34
      %p36 = scmp.ne.s32.totalorder %s25, %s28
      %p37 = scmp.eq.s32.totalorder %s20, 1
      %p38 = por %p36, %p37
      %p39 = scmp.ne.s32.totalorder %s28, %s29
      %p40 = scmp.eq.s32.totalorder %s20, 0
      %p41 = por %p39, %p40
      %p42 = scmp.ne.s32.totalorder %s28, %s29
      %p43 = scmp.eq.s32.totalorder %s21, 1
      %p44 = por %p42, %p43
      %p46 = scmp.ne.s32.totalorder %s29, %s45
      %p47 = scmp.eq.s32.totalorder %s21, 0
      %p48 = por %p46, %p47
      %s50 = sadd.s32 %s49, 1
      %p53 = scmp.eq.s32.totalorder %s15, 1
      %p54 = scmp.ne.s32.totalorder %s49, %s51
      %p55 = scmp.eq.s32.totalorder %s15, 0
      %p56 = por %p54, %p55
      %p57 = scmp.ne.s32.totalorder %s49, %s51
      %p58 = scmp.eq.s32.totalorder %s20, 1
      %p59 = por %p57, %p58
      %p60 = scmp.ne.s32.totalorder %s51, %s52
      %p61 = scmp.eq.s32.totalorder %s20, 0
      %p62 = por %p60, %p61
      %p63 = scmp.ne.s32.totalorder %s51, %s52
      %p64 = scmp.eq.s32.totalorder %s21, 1
      %p65 = por %p63, %p64
      %p67 = scmp.ne.s32.totalorder %s52, %s66
      %p68 = scmp.eq.s32.totalorder %s21, 0
      %p69 = por %p67, %p68
      %s71 = sadd.s32 %s70, 1
      %p74 = scmp.eq.s32.totalorder %s15, 1
      %p75 = scmp.ne.s32.totalorder %s70, %s72
      %p76 = scmp.eq.s32.totalorder %s15, 0
      %p77 = por %p75, %p76
      %p78 = scmp.ne.s32.totalorder %s70, %s72
      %p79 = scmp.eq.s32.totalorder %s20, 1
      %p80 = por %p78, %p79
      %p81 = scmp.ne.s32.totalorder %s72, %s73
      %p82 = scmp.eq.s32.totalorder %s20, 0
      %p83 = por %p81, %p82
      %p84 = scmp.ne.s32.totalorder %s72, %s73
      %p85 = scmp.eq.s32.totalorder %s21, 1
      %p86 = por %p84, %p85
      %p88 = scmp.ne.s32.totalorder %s73, %s87
      %p89 = scmp.eq.s32.totalorder %s21, 0
      %p90 = por %p88, %p89
      %s91 = ssub.s32 %s15, %s22
      %p92 = scmp.eq.s32.totalorder %s91, 0
      %s94 = sadd.s32 %s93, 1
      %s95 = scalar_select %p92, %s93, %s94
      %p98 = pneg %p92
      %p99 = scmp.eq.s32.totalorder %s15, 1
      %p100 = por %p98, %p99
      %p101 = scmp.ne.s32.totalorder %s93, %s96
      %p102 = scmp.eq.s32.totalorder %s15, 0
      %p103 = por %p101, %p102
      %p104 = scmp.ne.s32.totalorder %s93, %s96
      %p105 = scmp.eq.s32.totalorder %s20, 1
      %p106 = por %p104, %p105
      %p107 = scmp.ne.s32.totalorder %s96, %s97
      %p108 = scmp.eq.s32.totalorder %s20, 0
      %p109 = por %p107, %p108
      %p110 = scmp.ne.s32.totalorder %s96, %s97
      %p111 = scmp.eq.s32.totalorder %s21, 1
      %p112 = por %p110, %p111
      %p114 = scmp.ne.s32.totalorder %s97, %s113
      %p115 = scmp.eq.s32.totalorder %s21, 0
      %p116 = por %p114, %p115
      %p117 = scmp.le.s32.totalorder 1, %s15
      %p118 = scmp.lt.s32.totalorder %s15, 3
      %p119 = pnand %p117, %p118
      %p120 = pneg %p119
      // Predicated region
      $region9: #{tpu_custom_call.1} parent=5 // pred_check
        _
      $region10: #{tpu_custom_call.1} parent=5 // pred_check_branch
        %122 = sbr.rel (%p119) target = $region12
      $region11: #{tpu_custom_call.1} parent=5 // pred_region
        %s123 = ssub.s32 %s15, 1
        // Predicated region
        $region13: #{tpu_custom_call.1} parent=11 // pred_check
          %p124 = pneg %p62
        $region14: #{tpu_custom_call.1} parent=11 // pred_check_branch
          %126 = sbr.rel (%p124) target = $region16
        $region15: #{tpu_custom_call.1} parent=11 // pred_region
          _
        $region16: #{tpu_custom_call.1} parent=11 // pred_fallthru
          _
        // Predicated region
        $region17: #{tpu_custom_call.1} parent=11 // pred_check
          %p127 = pneg %p83
        $region18: #{tpu_custom_call.1} parent=11 // pred_check_branch
          %129 = sbr.rel (%p127) target = $region20
        $region19: #{tpu_custom_call.1} parent=11 // pred_region
          _
        $region20: #{tpu_custom_call.1} parent=11 // pred_fallthru
          _
      $region12: #{tpu_custom_call.1} parent=5 // pred_fallthru
        _
      %p130 = scmp.lt.s32.totalorder %s15, 2
      // Predicated region
      $region21: #{tpu_custom_call.1} parent=5 // pred_check
        %p131 = pneg %p130
      $region22: #{tpu_custom_call.1} parent=5 // pred_check_branch
        %133 = sbr.rel (%p131) target = $region24
      $region23: #{tpu_custom_call.1} parent=5 // pred_region
        // Predicated region
        $region25: #{tpu_custom_call.1} parent=23 // pred_check
          %p134 = pneg %p35
        $region26: #{tpu_custom_call.1} parent=23 // pred_check_branch
          %136 = sbr.rel (%p134) target = $region28
        $region27: #{tpu_custom_call.1} parent=23 // pred_region
          %s137 = sand.u32 %s25, 1
          %s138 = scalar_lea.sflag [#allocation3], %s137
          %s139 = sand.u32 %s25, 1
          %s140 = smul.addr %s139, 8
          %s141 = scalar_lea.vmem [#allocation2], %s140
          %143 = vsyncadd %s138, 0
          %s144 = smul.addr %s15, 2
          %s145 = smul.addr %s144, 4
          %s146 = scalar_lea.hbm %s0, %s145
          %s148 = sshll.u32 %s146, 4
          %s149 = int_to_ptr.hbm [resolvable:$true] %s148
          %s150 = sshll.u32 %s141, 4
          %s151 = int_to_ptr.vmem [resolvable:$true] %s150
          %153 = dma.hbm_to_vmem [thread:$0]  %s149, 128, %s151, %s138
        $region28: #{tpu_custom_call.1} parent=23 // pred_fallthru
          _
      $region24: #{tpu_custom_call.1} parent=5 // pred_fallthru
        _
      %p154 = scmp.le.s32.totalorder 1, %s15
      %p155 = scmp.lt.s32.totalorder %s15, 3
      %p156 = pnand %p154, %p155
      %p157 = pneg %p156
      // Predicated region
      $region29: #{tpu_custom_call.1} parent=5 // pred_check
        _
      $region30: #{tpu_custom_call.1} parent=5 // pred_check_branch
        %159 = sbr.rel (%p156) target = $region32
      $region31: #{tpu_custom_call.1} parent=5 // pred_region
        %s160 = ssub.s32 %s15, 1
        %s161 = sand.u32 %s28, 1
        %s162 = scalar_lea.sflag [#allocation3], %s161
        %s163 = sand.u32 %s28, 1
        %s164 = smul.addr %s163, 8
        %s165 = scalar_lea.vmem [#allocation2], %s164
        // Predicated region
        $region33: #{tpu_custom_call.1} parent=31 // pred_check
          %p166 = pneg %p41
        $region34: #{tpu_custom_call.1} parent=31 // pred_check_branch
          %168 = sbr.rel (%p166) target = $region36
        $region35: #{tpu_custom_call.1} parent=31 // pred_region
          %170 = dma.done %s162, 128
        $region36: #{tpu_custom_call.1} parent=31 // pred_fallthru
          _
        %s171 = sand.u32 %s28, 1
        %s172 = scalar_lea.sflag [#allocation3], %s171
        %s173 = sand.u32 %s28, 1
        %s174 = smul.addr %s173, 8
        %s175 = scalar_lea.vmem [#allocation2], %s174
        %p176 = pneg %p41
        %p177 = pneg %p38
        %p178 = pneg %p62
        %p179 = pneg %p59
        %p180 = pneg %p83
        %p181 = pneg %p80
        %p182 = pneg %p109
        %p183 = pneg %p106
        %s184 = sand.u32 %s96, 1
        %s185 = scalar_lea.sflag [#allocation4], %s184
        %s186 = sand.u32 %s96, 1
        %s187 = smul.addr %s186, 8
        %s188 = scalar_lea.vmem [#allocation5], %s187
        %v189 = vld [vmem:[%s165] sm:$0xff]
        %191 = vst [vmem:[#allocation1] ss:$2 sm:$0xff] %v189
        %v192 = vld.sshfl [vmem:[#allocation1] sm:$0xff pattern:$0x75316420]
        %v193 = vld.sshfl [vmem:[#allocation1 + $0x8] sm:$0xff pattern:$0x75316420]
        %vm196 = vcmask 1043456
        %v197 = vsel %vm196, %v192, 0.0
        %v198 = vsel %vm196, %v193, 0.0
        %v199 = vadd.f32 %v197, %v198
        %200 = vadd.xlane.f32.xlu0 %v199
        %v201 = vpop.xlane.xlu0 %200
        %v202 = vmul.f32 %v201, 0.00390625
        %v203 = vld [vmem:[%s1] sm:$0x3]
        %vm204 = vcmask 31744
        %v206 = vsel %vm204, %v203, 0
        %v209 = vsel %vm196, %v202, 0
        %211 = vmatpush.msra.mxu0 0.0
        %212 = vmatpush.msra.mxu0 0.0
        %213 = vmatpush.msra.mxu0 0.0
        %214 = vmatpush.msra.mxu0 0.0
        %215 = vmatpush.msra.mxu0 0.0
        %216 = vmatpush.msra.mxu0 0.0
        %217 = vmatpush.msra.mxu0 0.0
        %218 = vmatpush.msra.mxu0 0.0
        %219 = vmatpush.msra.mxu0 0.0
        %220 = vmatpush.msra.mxu0 0.0
        %221 = vmatpush.msra.mxu0 0.0
        %222 = vmatpush.msra.mxu0 0.0
        %223 = vmatpush.msra.mxu0 0.0
        %224 = vmatpush.msra.mxu0 0.0
        %225 = vmatpush.msra.mxu0 0.0
        %226 = vmatpush.msra.mxu0 %v209
        %227 = vmatmul.f32.gmra.mxu0 %v206
        %v228 = vpop.f32.mrf.mxu0
        %v229 = vadd.f32 0.0, %v228
        %230 = vdwg.mxu0
        %v231 = vmax.f32 %v229, 0.0
        %v232 = vld [vmem:[%s2] sm:$0xf]
        %vm233 = vcmask 15360
        %v235 = vsel %vm233, %v232, 0
        %vm237 = vcmask 1041408
        %v239 = vsel %vm237, %v231, 0
        %241 = vmatpush.msra.mxu0 0.0
        %242 = vmatpush.msra.mxu0 0.0
        %243 = vmatpush.msra.mxu0 0.0
        %244 = vmatpush.msra.mxu0 0.0
        %245 = vmatpush.msra.mxu0 0.0
        %246 = vmatpush.msra.mxu0 0.0
        %247 = vmatpush.msra.mxu0 0.0
        %248 = vmatpush.msra.mxu0 0.0
        %249 = vmatpush.msra.mxu0 0.0
        %250 = vmatpush.msra.mxu0 0.0
        %251 = vmatpush.msra.mxu0 0.0
        %252 = vmatpush.msra.mxu0 0.0
        %253 = vmatpush.msra.mxu0 0.0
        %254 = vmatpush.msra.mxu0 0.0
        %255 = vmatpush.msra.mxu0 0.0
        %256 = vmatpush.msra.mxu0 %v239
        %257 = vmatmul.f32.gmra.mxu0 %v235
        %v258 = vpop.f32.mrf.mxu0
        %v259 = vadd.f32 0.0, %v258
        %260 = vdwg.mxu0
        %v261 = vxor.u32 %v259, 2147483648
        %v262 = vmul.f32 %v261, 1.442695
        %v263 = vpow.pop %v262
        %v264 = vadd.f32 %v263, 1.0
        %v265 = vrcp.pop %v264
        %v266 = vmul.f32 %v264, %v265
        %v267 = vsub.f32 1.0, %v266
        %v268 = vmul.f32 %v265, %v267
        %v269 = vadd.f32 %v265, %v268
        %vm270 = vweird.f32 %v264
        %vm271 = vweird.f32 %v265
        %vm272 = vmor %vm270, %vm271
        %v273 = vsel %vm272, %v265, %v269
        %v274 = vand.u32 2147483647, %v264
        %vm275 = vcmp.eq.f32.partialorder %v274, 8.507059e+37
        %v276 = vand.u32 %v264, 2147483648
        %v277 = vor.u32 1.1754944e-38, %v276
        %v278 = vsel %vm275, %v277, %v273
        %v279 = vmul.f32 1.0, %v278
        %281 = vset.pattern.permute.xlu0 0
        %282 = vperm.xlu0 %281, %v279
        %v283 = vpop.permute.xlu0 %282
        %v285 = vunpack.c.l.s4 839922192
        %v286 = vunpack.c.0.s8 %v285
        %v287 = vperm.slane %v283, %v286
        %v289 = vmul.f32 %v189, %v287
        %290 = vst [vmem:[%s188] sm:$0xff] %v289
        %s291 = sand.u32 %s96, 1
        %s292 = scalar_lea.sflag [#allocation4], %s291
        %s293 = sand.u32 %s96, 1
        %s294 = smul.addr %s293, 8
        %s295 = scalar_lea.vmem [#allocation5], %s294
        // Predicated region
        $region37: #{tpu_custom_call.1} parent=31 // pred_check
          %p296 = pneg %p106
        $region38: #{tpu_custom_call.1} parent=31 // pred_check_branch
          %298 = sbr.rel (%p296) target = $region40
        $region39: #{tpu_custom_call.1} parent=31 // pred_region
          %300 = vsyncadd %s292, 0
          %s301 = smul.addr %s20, 2
          %s302 = smul.addr %s301, 4
          %s303 = scalar_lea.hbm %s3, %s302
          %s305 = sshll.u32 %s295, 4
          %s306 = int_to_ptr.vmem [resolvable:$true] %s305
          %s307 = sshll.u32 %s303, 4
          %s308 = int_to_ptr.hbm [resolvable:$true] %s307
          %310 = dma.vmem_to_hbm [thread:$0]  %s306, 128, %s308, %s292
        $region40: #{tpu_custom_call.1} parent=31 // pred_fallthru
          _
      $region32: #{tpu_custom_call.1} parent=5 // pred_fallthru
        _
      %p311 = scmp.le.s32.totalorder 2, %s15
      // Predicated region
      $region41: #{tpu_custom_call.1} parent=5 // pred_check
        %p312 = pneg %p311
      $region42: #{tpu_custom_call.1} parent=5 // pred_check_branch
        %314 = sbr.rel (%p312) target = $region44
      $region43: #{tpu_custom_call.1} parent=5 // pred_region
        %s315 = ssub.s32 %s15, 2
        // Predicated region
        $region45: #{tpu_custom_call.1} parent=43 // pred_check
          %p316 = pneg %p112
        $region46: #{tpu_custom_call.1} parent=43 // pred_check_branch
          %318 = sbr.rel (%p316) target = $region48
        $region47: #{tpu_custom_call.1} parent=43 // pred_region
          %s319 = sand.u32 %s97, 1
          %s320 = scalar_lea.sflag [#allocation4], %s319
          %s321 = sand.u32 %s97, 1
          %s322 = smul.addr %s321, 8
          %s323 = scalar_lea.vmem [#allocation5], %s322
          %325 = dma.done %s320, 128
        $region48: #{tpu_custom_call.1} parent=43 // pred_fallthru
          _
      $region44: #{tpu_custom_call.1} parent=5 // pred_fallthru
        _
    $region6: #{tpu_custom_call.1} parent=1 // loop_footer
      %s19 = sadd.s32 1, %s15
    $region7: #{tpu_custom_call.1} parent=1 // loop_footer_branch
      %14 = sbr.rel target = $region3
    $region8: #{tpu_custom_call.1} parent=1 // loop_exit
      _
    %326 = vsyncpa [#allocation3], 1
    %s327 = scalar_lea.sflag [#allocation3], 1
    %328 = vsyncpa %s327, 1
    %329 = vsyncpa [#allocation4], 1
    %s330 = scalar_lea.sflag [#allocation4], 1
    %331 = vsyncpa %s330, 1

</llo_original>
